<compile_context>
chip_gen: v5e
topology: v5e:2x2
jax: 0.10.0
libtpu: 0.0.40
codegen_flags: <defaults>
</compile_context>

<pallas_src>
import jax
import jax.numpy as jnp
from jax.experimental import pallas as pl
from jax.experimental.pallas import tpu as pltpu


def vq_kernel(x_ref, e_ref, et_ref, e2h_ref, q_ref, idx_ref, hist_ref, sse_ref):
    x_t = x_ref[...].astype(jnp.float32)        # (C, TILE_M)   lane-dense
    e = e_ref[...]                              # (K, C) f32
    e_t = et_ref[...]                           # (C, K) f32
    e2_half = e2h_ref[...]                      # (K, 1) f32 == 0.5*||e_k||^2
    K = e.shape[0]

    # argmin_k ||x - e_k||^2 == argmin_k (0.5*||e_k||^2 - e_k . x)
    xe = jnp.dot(e, x_t, preferred_element_type=jnp.float32)     # (K, TILE_M)
    dist = e2_half - xe                                          # (K, TILE_M)

    # argmin over codes (sublane axis), first-occurrence like torch.argmin.
    k_col = jax.lax.broadcasted_iota(jnp.int32, (K, 1), 0)       # (K, 1)
    min_d = jnp.min(dist, axis=0, keepdims=True)                 # (1, TILE_M)
    idx = jnp.min(jnp.where(dist == min_d, k_col, K),
                  axis=0, keepdims=True)                         # (1, TILE_M) int32

    enc = (k_col == idx).astype(jnp.float32)                     # one-hot (K, TILE_M)

    # codebook lookup: q^T = E^T @ onehot  -> (C, TILE_M)
    q_t = jnp.dot(e_t, enc, preferred_element_type=jnp.float32)
    d = q_t - x_t

    q_ref[...] = q_t.astype(q_ref.dtype)        # value-identical to the STE output
    idx_ref[...] = idx                          # int32 code indices (lane-dense)
    hist_ref[...] = jnp.sum(enc, axis=1, keepdims=True)   # (K, 1) per-tile counts
    sse_ref[...] = jnp.sum(d * d)[None, None]   # per-tile partial SSE


def _pick_tile(M, C, K, budget_bytes, min_steps=1):
    """Largest VMEM-feasible, 128-aligned divisor of M (columns per grid step)."""
    # Rough f32 bytes per column of tile:
    #   x block (dbl-buf) + q block (dbl-buf) + idx block (dbl-buf, int32)
    #   + ~6 (K, tile) f32 temporaries (xe, dist, where, enc, d, d*d).
    bytes_per_col = 4 * (4 * C + 4 * C + 4 + 6 * K)
    cap = budget_bytes // bytes_per_col
    cap = min(cap, M)
    if min_steps > 1:
        cap = min(cap, max(128, M // min_steps))   # keep >= min_steps grid steps
    cap = max(128, (cap // 128) * 128)
    if M % 128 == 0:
        t = min(cap, M)
        while t >= 128:
            if M % t == 0:
                return t
            t -= 128
    # M has no 128-aligned divisor: a full-M block is always a legal BlockSpec,
    # but only use it if it fits the budget.
    if M * bytes_per_col <= budget_bytes:
        return M
    # TODO(synk): masked / pl.BoundedSlice tail handling for awkward M that
    # neither has a 128-aligned divisor nor fits VMEM as a single block.
    raise ValueError(f"No VMEM-feasible tile for M={M} (C={C}, K={K}).")


def vector_quantizer_ema_forward(x, embedding, commitment_cost,
                                 vmem_tile_budget_bytes=24 * 1024 * 1024):
    """x: (B, C, D, H, W) float32 (PyTorch NCDHW).  embedding: (K, C)."""
    B, C, D, H, W = x.shape
    K, Cd = embedding.shape
    assert Cd == C
    M = D * H * W

    x3 = x.reshape(B, C, M)                          # free reshape, no transpose
    # Keep >= 2 total grid steps so both v7x TensorCores get work even at B=1
    # (harmless on single-TC v5e/v6e).
    min_steps = 2 if B < 2 else 1
    tile = _pick_tile(M, C, K, vmem_tile_budget_bytes, min_steps=min_steps)
    assert M % tile == 0
    T = M // tile
    grid = (B, T)

    emb_f32 = embedding.astype(jnp.float32)
    e_t = emb_f32.T                                   # (C, K), tiny
    e2_half = 0.5 * jnp.sum(emb_f32 * emb_f32, axis=1, keepdims=True)   # (K, 1)

    q3, idx, hist, sse = pl.pallas_call(
        vq_kernel,
        out_shape=(
            jax.ShapeDtypeStruct((B, C, M), x.dtype),        # quantized (NCDHW-flat)
            jax.ShapeDtypeStruct((B, 1, M), jnp.int32),      # code indices
            jax.ShapeDtypeStruct((B, T, K, 1), jnp.float32), # per-tile code counts
            jax.ShapeDtypeStruct((B, T, 1, 1), jnp.float32), # per-tile SSE partials
        ),
        grid_spec=pltpu.PrefetchScalarGridSpec(
            num_scalar_prefetch=0,
            grid=grid,
            in_specs=[
                pl.BlockSpec((None, C, tile), lambda b, j: (b, 0, j)),  # x^T block
                pl.BlockSpec((K, C), lambda b, j: (0, 0)),              # E
                pl.BlockSpec((C, K), lambda b, j: (0, 0)),              # E^T
                pl.BlockSpec((K, 1), lambda b, j: (0, 0)),              # 0.5*||E||^2
            ],
            out_specs=[
                pl.BlockSpec((None, C, tile), lambda b, j: (b, 0, j)),
                pl.BlockSpec((None, 1, tile), lambda b, j: (b, 0, j)),
                pl.BlockSpec((None, None, K, 1), lambda b, j: (b, j, 0, 0)),
                pl.BlockSpec((None, None, 1, 1), lambda b, j: (b, j, 0, 0)),
            ],
        ),
        compiler_params=pltpu.CompilerParams(
            # No resident accumulators / cross-step state -> both axes parallel
            # (shards across the 2 TensorCores on v7x; harmless on v5e/v6e).
            dimension_semantics=("parallel", "parallel"),
            # Safe scoped limit on v7x (64 MiB VMEM) and generous on v5e/v6e;
            # the tile budget above keeps actual usage well below this.
            vmem_limit_bytes=48 * 1024 * 1024,
        ),
    )(x3, emb_f32, e_t, e2_half)

    # Tiny scalar / small-tensor epilogue in plain JAX.
    e_latent_loss = jnp.sum(sse) / (B * C * M)       # F.mse_loss (mean over all elems)
    loss = commitment_cost * e_latent_loss

    # avg_probs / perplexity from the in-kernel histogram (no (N, K) re-read).
    n_rows = B * M
    counts = jnp.sum(hist, axis=(0, 1)).reshape(K)   # (K,) exact integer counts
    avg_probs = counts / n_rows
    perplexity = jnp.exp(-jnp.sum(avg_probs * jnp.log(avg_probs + 1e-10)))

    # Dense one-hot is only for module-interface parity (the torch module
    # returns it); skip it in callers that don't consume `encodings`.
    idx_flat = idx.reshape(-1)                        # row order matches torch view(-1, C)
    encodings = jax.nn.one_hot(idx_flat, K, dtype=jnp.float32)   # (N, K)

    quantized = q3.reshape(B, C, D, H, W)             # already NCDHW, no transpose
    return loss, quantized, perplexity, encodings


def _reference(x, embedding, commitment_cost):
    """Pure-JAX port of the PyTorch forward (eval mode) for validation."""
    B, C, D, H, W = x.shape
    inputs = jnp.transpose(x, (0, 2, 3, 4, 1))
    flat = inputs.reshape(-1, C)
    dist = (jnp.sum(flat ** 2, axis=1, keepdims=True)
            + jnp.sum(embedding ** 2, axis=1)
            - 2.0 * flat @ embedding.T)
    idx = jnp.argmin(dist, axis=1)
    enc = jax.nn.one_hot(idx, embedding.shape[0], dtype=jnp.float32)
    q = (enc @ embedding).reshape(inputs.shape)
    e_latent = jnp.mean((q - inputs) ** 2)
    loss = commitment_cost * e_latent
    avg = jnp.mean(enc, axis=0)
    perp = jnp.exp(-jnp.sum(avg * jnp.log(avg + 1e-10)))
    return loss, jnp.transpose(q, (0, 4, 1, 2, 3)), perp, enc


if __name__ == "__main__":
    # Module hyperparameters (synthetic, deterministic init).
    num_embeddings = 16      # K
    embedding_dim = 8        # C
    commitment_cost = 0.25
    # decay / epsilon only matter for the training-mode EMA update (not run here)

    key = jax.random.PRNGKey(0)
    k_x, k_e = jax.random.split(key)

    # Small 5D NCDHW input consistent with the module's conv-style input.
    B, D, H, W = 2, 4, 16, 16                        # M = 1024 spatial positions
    x = jax.random.normal(k_x, (B, embedding_dim, D, H, W), dtype=jnp.float32)
    embedding = jax.random.normal(k_e, (num_embeddings, embedding_dim),
                                  dtype=jnp.float32)

    fwd = jax.jit(vector_quantizer_ema_forward)
    loss, quantized, perplexity, encodings = fwd(x, embedding, commitment_cost)
    jax.block_until_ready((loss, quantized, perplexity, encodings))

    # Shape / sanity checks + numerical check against the pure-JAX reference.
    assert quantized.shape == x.shape
    assert encodings.shape == (B * D * H * W, num_embeddings)
    assert jnp.isfinite(loss) and jnp.isfinite(perplexity)

    r_loss, r_q, r_perp, r_enc = _reference(x, embedding, commitment_cost)
    assert jnp.allclose(loss, r_loss, atol=1e-5, rtol=1e-5)
    assert jnp.allclose(perplexity, r_perp, atol=1e-4, rtol=1e-5)
    assert jnp.allclose(quantized, r_q, atol=1e-4, rtol=1e-5)
    assert jnp.array_equal(encodings, r_enc)

    print("KERNEL_OK")
</pallas_src>

<mosaic_0001>
module attributes {stable_mosaic.version = 11 : i64} {
  func.func @vq_kernel(%arg0: i32, %arg1: i32, %arg2: memref<1x8x1024xf32, #tpu.memory_space<vmem>>, %arg3: memref<16x8xf32, #tpu.memory_space<vmem>>, %arg4: memref<8x16xf32, #tpu.memory_space<vmem>>, %arg5: memref<16x1xf32, #tpu.memory_space<vmem>>, %arg6: memref<1x8x1024xf32, #tpu.memory_space<vmem>>, %arg7: memref<1x1x1024xi32, #tpu.memory_space<vmem>>, %arg8: memref<1x1x16x1xf32, #tpu.memory_space<vmem>>, %arg9: memref<1x1x1x1xf32, #tpu.memory_space<vmem>>) attributes {dimension_semantics = [#tpu.dimension_semantics<parallel>, #tpu.dimension_semantics<parallel>], iteration_bounds = array<i64: 2, 1>, scalar_prefetch = 0 : i64, scratch_operands = 0 : i64, tpu.core_type = #tpu.core_type<tc>, window_params = [{transform_indices = @transform_0, window_bounds = array<i64: 1, 8, 1024>}, {pipeline_mode = #tpu.pipeline_mode<synchronous>, transform_indices = @transform_1, window_bounds = array<i64: 16, 8>}, {pipeline_mode = #tpu.pipeline_mode<synchronous>, transform_indices = @transform_2, window_bounds = array<i64: 8, 16>}, {pipeline_mode = #tpu.pipeline_mode<synchronous>, transform_indices = @transform_3, window_bounds = array<i64: 16, 1>}, {transform_indices = @transform_4, window_bounds = array<i64: 1, 8, 1024>}, {transform_indices = @transform_5, window_bounds = array<i64: 1, 1, 1024>}, {transform_indices = @transform_6, window_bounds = array<i64: 1, 1, 16, 1>}, {transform_indices = @transform_7, window_bounds = array<i64: 1, 1, 1, 1>}]} {
    %c0 = arith.constant 0 : index
    %c0_0 = arith.constant 0 : index
    %c0_1 = arith.constant 0 : index
    %0 = vector.load %arg2[%c0, %c0_0, %c0_1] : memref<1x8x1024xf32, #tpu.memory_space<vmem>>, vector<1x8x1024xf32>
    %1 = vector.shape_cast %0 : vector<1x8x1024xf32> to vector<8x1024xf32>
    %c0_2 = arith.constant 0 : index
    %c0_3 = arith.constant 0 : index
    %2 = vector.load %arg3[%c0_2, %c0_3] : memref<16x8xf32, #tpu.memory_space<vmem>>, vector<16x8xf32>
    %c0_4 = arith.constant 0 : index
    %c0_5 = arith.constant 0 : index
    %3 = vector.load %arg4[%c0_4, %c0_5] : memref<8x16xf32, #tpu.memory_space<vmem>>, vector<8x16xf32>
    %c0_6 = arith.constant 0 : index
    %c0_7 = arith.constant 0 : index
    %4 = vector.load %arg5[%c0_6, %c0_7] : memref<16x1xf32, #tpu.memory_space<vmem>>, vector<16x1xf32>
    %cst = arith.constant dense<0.000000e+00> : vector<16x1024xf32>
    %5 = tpu.matmul %2, %1, %cst {dimension_numbers = #tpu.dot_dimension_numbers<[1], [0], [0], [1], [0, 0, 1, 1], [], []>} : vector<16x8xf32>, vector<8x1024xf32>, vector<16x1024xf32> -> vector<16x1024xf32>
    %6 = vector.broadcast %4 : vector<16x1xf32> to vector<16x1024xf32>
    %7 = arith.subf %6, %5 : vector<16x1024xf32>
    %8 = tpu.iota {dimensions = array<i32: 0>} : vector<16x1xi32>
    %cst_8 = arith.constant dense<0x7F800000> : vector<1024xf32>
    %9 = vector.multi_reduction <minimumf>, %7, %cst_8 [0] : vector<16x1024xf32> to vector<1024xf32>
    %10 = vector.shape_cast %9 : vector<1024xf32> to vector<1x1024xf32>
    %11 = vector.broadcast %10 : vector<1x1024xf32> to vector<16x1024xf32>
    %12 = arith.cmpf oeq, %7, %11 : vector<16x1024xf32>
    %c16_i32 = arith.constant 16 : i32
    %13 = vector.shape_cast %8 : vector<16x1xi32> to vector<16x1xi32>
    %14 = vector.broadcast %13 : vector<16x1xi32> to vector<16x1024xi32>
    %15 = vector.broadcast %c16_i32 : i32 to vector<16x1024xi32>
    %16 = arith.select %12, %14, %15 : vector<16x1024xi1>, vector<16x1024xi32>
    %cst_9 = arith.constant dense<2147483647> : vector<1024xi32>
    %17 = vector.multi_reduction <minsi>, %16, %cst_9 [0] : vector<16x1024xi32> to vector<1024xi32>
    %18 = vector.shape_cast %17 : vector<1024xi32> to vector<1x1024xi32>
    %19 = vector.broadcast %8 : vector<16x1xi32> to vector<16x1024xi32>
    %20 = vector.broadcast %18 : vector<1x1024xi32> to vector<16x1024xi32>
    %21 = arith.cmpi eq, %19, %20 : vector<16x1024xi32>
    %22 = arith.extui %21 : vector<16x1024xi1> to vector<16x1024xi32>
    %23 = arith.sitofp %22 : vector<16x1024xi32> to vector<16x1024xf32>
    %cst_10 = arith.constant dense<0.000000e+00> : vector<8x1024xf32>
    %24 = tpu.matmul %3, %23, %cst_10 {dimension_numbers = #tpu.dot_dimension_numbers<[1], [0], [0], [1], [0, 0, 1, 1], [], []>} : vector<8x16xf32>, vector<16x1024xf32>, vector<8x1024xf32> -> vector<8x1024xf32>
    %25 = arith.subf %24, %1 : vector<8x1024xf32>
    %c0_11 = arith.constant 0 : index
    %c0_12 = arith.constant 0 : index
    %c0_13 = arith.constant 0 : index
    %26 = vector.load %arg6[%c0_11, %c0_12, %c0_13] : memref<1x8x1024xf32, #tpu.memory_space<vmem>>, vector<1x8x1024xf32>
    %27 = vector.shape_cast %26 : vector<1x8x1024xf32> to vector<8x1024xf32>
    %28 = vector.shape_cast %24 : vector<8x1024xf32> to vector<1x8x1024xf32>
    tpu.vector_store %arg6[%c0_11, %c0_12, %c0_13], %28 {strides = array<i32>} : memref<1x8x1024xf32, #tpu.memory_space<vmem>>, vector<1x8x1024xf32>,
    %c0_14 = arith.constant 0 : index
    %c0_15 = arith.constant 0 : index
    %c0_16 = arith.constant 0 : index
    %29 = vector.load %arg7[%c0_14, %c0_15, %c0_16] : memref<1x1x1024xi32, #tpu.memory_space<vmem>>, vector<1x1x1024xi32>
    %30 = vector.shape_cast %29 : vector<1x1x1024xi32> to vector<1x1024xi32>
    %31 = vector.shape_cast %18 : vector<1x1024xi32> to vector<1x1x1024xi32>
    tpu.vector_store %arg7[%c0_14, %c0_15, %c0_16], %31 {strides = array<i32>} : memref<1x1x1024xi32, #tpu.memory_space<vmem>>, vector<1x1x1024xi32>,
    %cst_17 = arith.constant dense<0.000000e+00> : vector<16xf32>
    %32 = vector.multi_reduction <add>, %23, %cst_17 [1] : vector<16x1024xf32> to vector<16xf32>
    %33 = vector.shape_cast %32 : vector<16xf32> to vector<16x1xf32>
    %c0_18 = arith.constant 0 : index
    %c0_19 = arith.constant 0 : index
    %c0_20 = arith.constant 0 : index
    %c0_21 = arith.constant 0 : index
    %34 = vector.load %arg8[%c0_18, %c0_19, %c0_20, %c0_21] : memref<1x1x16x1xf32, #tpu.memory_space<vmem>>, vector<1x1x16x1xf32>
    %35 = vector.shape_cast %34 : vector<1x1x16x1xf32> to vector<16x1xf32>
    %36 = vector.shape_cast %33 : vector<16x1xf32> to vector<1x1x16x1xf32>
    tpu.vector_store %arg8[%c0_18, %c0_19, %c0_20, %c0_21], %36 {strides = array<i32>} : memref<1x1x16x1xf32, #tpu.memory_space<vmem>>, vector<1x1x16x1xf32>,
    %37 = arith.mulf %25, %25 : vector<8x1024xf32>
    %38 = vector.shape_cast %37 : vector<8x1024xf32> to vector<1x8x1024xf32>
    %cst_22 = arith.constant dense<0.000000e+00> : vector<1xf32>
    %39 = vector.multi_reduction <add>, %38, %cst_22 [1, 2] : vector<1x8x1024xf32> to vector<1xf32>
    %40 = vector.shape_cast %39 : vector<1xf32> to vector<1x1x1xf32>
    %41 = vector.extract %40[0, 0, 0] : f32 from vector<1x1x1xf32>
    %42 = vector.broadcast %41 : f32 to vector<1x1xf32>
    %c0_23 = arith.constant 0 : index
    %c0_24 = arith.constant 0 : index
    %c0_25 = arith.constant 0 : index
    %c0_26 = arith.constant 0 : index
    %43 = vector.load %arg9[%c0_23, %c0_24, %c0_25, %c0_26] : memref<1x1x1x1xf32, #tpu.memory_space<vmem>>, vector<1x1x1x1xf32>
    %44 = vector.shape_cast %43 : vector<1x1x1x1xf32> to vector<1x1xf32>
    %45 = vector.shape_cast %42 : vector<1x1xf32> to vector<1x1x1x1xf32>
    tpu.vector_store %arg9[%c0_23, %c0_24, %c0_25, %c0_26], %45 {strides = array<i32>} : memref<1x1x1x1xf32, #tpu.memory_space<vmem>>, vector<1x1x1x1xf32>,
    return
  }
  func.func @transform_0(%arg0: i32, %arg1: i32) -> (i32, i32, i32) {
    %c0_i32 = arith.constant 0 : i32
    %c0_i32_0 = arith.constant 0 : i32
    return %arg0, %c0_i32, %arg1 : i32, i32, i32
  }
  func.func @transform_1(%arg0: i32, %arg1: i32) -> (i32, i32) {
    %c0_i32 = arith.constant 0 : i32
    %c0_i32_0 = arith.constant 0 : i32
    %c0_i32_1 = arith.constant 0 : i32
    return %c0_i32, %c0_i32_0 : i32, i32
  }
  func.func @transform_2(%arg0: i32, %arg1: i32) -> (i32, i32) {
    %c0_i32 = arith.constant 0 : i32
    %c0_i32_0 = arith.constant 0 : i32
    %c0_i32_1 = arith.constant 0 : i32
    return %c0_i32, %c0_i32_0 : i32, i32
  }
  func.func @transform_3(%arg0: i32, %arg1: i32) -> (i32, i32) {
    %c0_i32 = arith.constant 0 : i32
    %c0_i32_0 = arith.constant 0 : i32
    %c0_i32_1 = arith.constant 0 : i32
    return %c0_i32, %c0_i32_0 : i32, i32
  }
  func.func @transform_4(%arg0: i32, %arg1: i32) -> (i32, i32, i32) {
    %c0_i32 = arith.constant 0 : i32
    %c0_i32_0 = arith.constant 0 : i32
    return %arg0, %c0_i32, %arg1 : i32, i32, i32
  }
  func.func @transform_5(%arg0: i32, %arg1: i32) -> (i32, i32, i32) {
    %c0_i32 = arith.constant 0 : i32
    %c0_i32_0 = arith.constant 0 : i32
    return %arg0, %c0_i32, %arg1 : i32, i32, i32
  }
  func.func @transform_6(%arg0: i32, %arg1: i32) -> (i32, i32, i32, i32) {
    %c0_i32 = arith.constant 0 : i32
    %c0_i32_0 = arith.constant 0 : i32
    %c0_i32_1 = arith.constant 0 : i32
    return %arg0, %arg1, %c0_i32, %c0_i32_0 : i32, i32, i32, i32
  }
  func.func @transform_7(%arg0: i32, %arg1: i32) -> (i32, i32, i32, i32) {
    %c0_i32 = arith.constant 0 : i32
    %c0_i32_0 = arith.constant 0 : i32
    %c0_i32_1 = arith.constant 0 : i32
    return %arg0, %arg1, %c0_i32, %c0_i32_0 : i32, i32, i32, i32
  }
}

</mosaic_0001>

<llo_original>
// kernel: vector_quantizer_ema_forward.1
$region0: #{vector_quantizer_ema_forward.1}
  #allocation0 [shape = 'u32[]', space=smem, size = 0x4, offset = 0x4, fixed_abs, tag = 'smem constant byte address 0x4 - core index']
  #allocation1 [shape = 'u32[72,128]{1,0:T(1,128)}', space=vmem, size = 0x9000, scoped, tag = 'internal scratch']
  %s0 = inlined_call_operand.vmem [shape: f32[2,8,1024], index: 0, kind: input, shape index: {}]
  %s1 = inlined_call_operand.vmem [shape: f32[16,8], index: 1, kind: input, shape index: {}]
  %s2 = inlined_call_operand.vmem [shape: f32[8,16], index: 2, kind: input, shape index: {}]
  %s3 = inlined_call_operand.vmem [shape: f32[16,1], index: 3, kind: input, shape index: {}]
  %s4 = inlined_call_operand.vmem [shape: f32[2,8,1024], index: 4, kind: output, shape index: {0}]
  %s5 = inlined_call_operand.vmem [shape: s32[2,1,1024], index: 5, kind: output, shape index: {1}]
  %s6 = inlined_call_operand.vmem [shape: f32[2,1,16,1], index: 6, kind: output, shape index: {2}]
  %s7 = inlined_call_operand.vmem [shape: f32[2,1,1,1], index: 7, kind: output, shape index: {3}]
  %8 = xla_tuple %s4, %s5, %s6, %s7
  %s9 = sld [smem:[#allocation0]]
  $region73: #{vector_quantizer_ema_forward.1} parent=0
    _
  %s11 = ssub.s32 1, %s9
  %s12 = scalar_select 0, %s11, %s9
  loop: start=0, step=1, limit=4
  $region2: #{vector_quantizer_ema_forward.1} parent=0 // loop_pre_header
    _
  $region3: #{vector_quantizer_ema_forward.1} parent=0 // loop_header
    %s14 = sphi 0, %s18
    %p15 = scmp.ge.s32.totalorder %s14, 4
    %s21 = sphi 0, %s33
    %s22 = sphi 0, %s29
    %s23 = sphi 0, %s21
    %s24 = sphi 0, %s22
    %s25 = sphi 0, %s23
    %s26 = sphi 0, %s24
    %s38 = sphi 0, %s40
    %s41 = sphi 0, %s38
    %s42 = sphi 0, %s41
    %s58 = sphi 0, %s42
    %s62 = sphi 0, %s62
    %s64 = sphi 0, %s62
    %s65 = sphi 0, %s64
    %s79 = sphi 0, %s65
    %s83 = sphi 0, %s83
    %s85 = sphi 0, %s83
    %s86 = sphi 0, %s85
    %s100 = sphi 0, %s86
    %s104 = sphi 0, %s104
    %s106 = sphi 0, %s104
    %s107 = sphi 0, %s106
    %s121 = sphi 0, %s107
    %s129 = sphi 0, %s131
    %s132 = sphi 0, %s129
    %s133 = sphi 0, %s132
    %s149 = sphi 0, %s133
    %s157 = sphi 0, %s159
    %s160 = sphi 0, %s157
    %s161 = sphi 0, %s160
    %s177 = sphi 0, %s161
    %s185 = sphi 0, %s187
    %s188 = sphi 0, %s185
    %s189 = sphi 0, %s188
    %s205 = sphi 0, %s189
    %s213 = sphi 0, %s215
    %s216 = sphi 0, %s213
    %s217 = sphi 0, %s216
    %s233 = sphi 0, %s217
  $region4: #{vector_quantizer_ema_forward.1} parent=0 // loop_header_branch
    %17 = sbr.rel (%p15) target = $region8
  $region5: #{vector_quantizer_ema_forward.1} parent=0 // loop_body
    %s19 = ssub.s32 %s14, 1
    %s20 = ssub.s32 %s14, 2
    %s27 = sadd.s32 1, %s22
    %p28 = scmp.ge.s32.totalorder %s27, 1
    %s29 = scalar_select %p28, 0, %s27
    %s30 = sadd.s32 1, %s21
    %s31 = scalar_select %p28, %s30, %s21
    %p32 = scmp.ge.s32.totalorder %s31, 2
    %s33 = scalar_select %p32, 0, %s31
    %s34 = ssub.s32 %s21, %s33
    %s35 = ssub.s32 %s22, %s29
    %s36 = sor.u32 %s34, %s35
    %p37 = scmp.eq.s32.totalorder %s36, 0
    %s39 = sadd.s32 %s38, 1
    %s40 = scalar_select %p37, %s38, %s39
    %p43 = pneg %p37
    %p44 = scmp.eq.s32.totalorder %s14, 1
    %p45 = por %p43, %p44
    %p46 = scmp.ne.s32.totalorder %s38, %s41
    %p47 = scmp.eq.s32.totalorder %s14, 0
    %p48 = por %p46, %p47
    %p49 = scmp.ne.s32.totalorder %s38, %s41
    %p50 = scmp.eq.s32.totalorder %s19, 1
    %p51 = por %p49, %p50
    %p52 = scmp.ne.s32.totalorder %s41, %s42
    %p53 = scmp.eq.s32.totalorder %s19, 0
    %p54 = por %p52, %p53
    %p55 = scmp.ne.s32.totalorder %s41, %s42
    %p56 = scmp.eq.s32.totalorder %s20, 1
    %p57 = por %p55, %p56
    %p59 = scmp.ne.s32.totalorder %s42, %s58
    %p60 = scmp.eq.s32.totalorder %s20, 0
    %p61 = por %p59, %p60
    %s63 = sadd.s32 %s62, 1
    %p66 = scmp.eq.s32.totalorder %s14, 1
    %p67 = scmp.ne.s32.totalorder %s62, %s64
    %p68 = scmp.eq.s32.totalorder %s14, 0
    %p69 = por %p67, %p68
    %p70 = scmp.ne.s32.totalorder %s62, %s64
    %p71 = scmp.eq.s32.totalorder %s19, 1
    %p72 = por %p70, %p71
    %p73 = scmp.ne.s32.totalorder %s64, %s65
    %p74 = scmp.eq.s32.totalorder %s19, 0
    %p75 = por %p73, %p74
    %p76 = scmp.ne.s32.totalorder %s64, %s65
    %p77 = scmp.eq.s32.totalorder %s20, 1
    %p78 = por %p76, %p77
    %p80 = scmp.ne.s32.totalorder %s65, %s79
    %p81 = scmp.eq.s32.totalorder %s20, 0
    %p82 = por %p80, %p81
    %s84 = sadd.s32 %s83, 1
    %p87 = scmp.eq.s32.totalorder %s14, 1
    %p88 = scmp.ne.s32.totalorder %s83, %s85
    %p89 = scmp.eq.s32.totalorder %s14, 0
    %p90 = por %p88, %p89
    %p91 = scmp.ne.s32.totalorder %s83, %s85
    %p92 = scmp.eq.s32.totalorder %s19, 1
    %p93 = por %p91, %p92
    %p94 = scmp.ne.s32.totalorder %s85, %s86
    %p95 = scmp.eq.s32.totalorder %s19, 0
    %p96 = por %p94, %p95
    %p97 = scmp.ne.s32.totalorder %s85, %s86
    %p98 = scmp.eq.s32.totalorder %s20, 1
    %p99 = por %p97, %p98
    %p101 = scmp.ne.s32.totalorder %s86, %s100
    %p102 = scmp.eq.s32.totalorder %s20, 0
    %p103 = por %p101, %p102
    %s105 = sadd.s32 %s104, 1
    %p108 = scmp.eq.s32.totalorder %s14, 1
    %p109 = scmp.ne.s32.totalorder %s104, %s106
    %p110 = scmp.eq.s32.totalorder %s14, 0
    %p111 = por %p109, %p110
    %p112 = scmp.ne.s32.totalorder %s104, %s106
    %p113 = scmp.eq.s32.totalorder %s19, 1
    %p114 = por %p112, %p113
    %p115 = scmp.ne.s32.totalorder %s106, %s107
    %p116 = scmp.eq.s32.totalorder %s19, 0
    %p117 = por %p115, %p116
    %p118 = scmp.ne.s32.totalorder %s106, %s107
    %p119 = scmp.eq.s32.totalorder %s20, 1
    %p120 = por %p118, %p119
    %p122 = scmp.ne.s32.totalorder %s107, %s121
    %p123 = scmp.eq.s32.totalorder %s20, 0
    %p124 = por %p122, %p123
    %s125 = ssub.s32 %s21, %s33
    %s126 = ssub.s32 %s22, %s29
    %s127 = sor.u32 %s125, %s126
    %p128 = scmp.eq.s32.totalorder %s127, 0
    %s130 = sadd.s32 %s129, 1
    %s131 = scalar_select %p128, %s129, %s130
    %p134 = pneg %p128
    %p135 = scmp.eq.s32.totalorder %s14, 1
    %p136 = por %p134, %p135
    %p137 = scmp.ne.s32.totalorder %s129, %s132
    %p138 = scmp.eq.s32.totalorder %s14, 0
    %p139 = por %p137, %p138
    %p140 = scmp.ne.s32.totalorder %s129, %s132
    %p141 = scmp.eq.s32.totalorder %s19, 1
    %p142 = por %p140, %p141
    %p143 = scmp.ne.s32.totalorder %s132, %s133
    %p144 = scmp.eq.s32.totalorder %s19, 0
    %p145 = por %p143, %p144
    %p146 = scmp.ne.s32.totalorder %s132, %s133
    %p147 = scmp.eq.s32.totalorder %s20, 1
    %p148 = por %p146, %p147
    %p150 = scmp.ne.s32.totalorder %s133, %s149
    %p151 = scmp.eq.s32.totalorder %s20, 0
    %p152 = por %p150, %p151
    %s153 = ssub.s32 %s21, %s33
    %s154 = ssub.s32 %s22, %s29
    %s155 = sor.u32 %s153, %s154
    %p156 = scmp.eq.s32.totalorder %s155, 0
    %s158 = sadd.s32 %s157, 1
    %s159 = scalar_select %p156, %s157, %s158
    %p162 = pneg %p156
    %p163 = scmp.eq.s32.totalorder %s14, 1
    %p164 = por %p162, %p163
    %p165 = scmp.ne.s32.totalorder %s157, %s160
    %p166 = scmp.eq.s32.totalorder %s14, 0
    %p167 = por %p165, %p166
    %p168 = scmp.ne.s32.totalorder %s157, %s160
    %p169 = scmp.eq.s32.totalorder %s19, 1
    %p170 = por %p168, %p169
    %p171 = scmp.ne.s32.totalorder %s160, %s161
    %p172 = scmp.eq.s32.totalorder %s19, 0
    %p173 = por %p171, %p172
    %p174 = scmp.ne.s32.totalorder %s160, %s161
    %p175 = scmp.eq.s32.totalorder %s20, 1
    %p176 = por %p174, %p175
    %p178 = scmp.ne.s32.totalorder %s161, %s177
    %p179 = scmp.eq.s32.totalorder %s20, 0
    %p180 = por %p178, %p179
    %s181 = ssub.s32 %s21, %s33
    %s182 = ssub.s32 %s22, %s29
    %s183 = sor.u32 %s181, %s182
    %p184 = scmp.eq.s32.totalorder %s183, 0
    %s186 = sadd.s32 %s185, 1
    %s187 = scalar_select %p184, %s185, %s186
    %p190 = pneg %p184
    %p191 = scmp.eq.s32.totalorder %s14, 1
    %p192 = por %p190, %p191
    %p193 = scmp.ne.s32.totalorder %s185, %s188
    %p194 = scmp.eq.s32.totalorder %s14, 0
    %p195 = por %p193, %p194
    %p196 = scmp.ne.s32.totalorder %s185, %s188
    %p197 = scmp.eq.s32.totalorder %s19, 1
    %p198 = por %p196, %p197
    %p199 = scmp.ne.s32.totalorder %s188, %s189
    %p200 = scmp.eq.s32.totalorder %s19, 0
    %p201 = por %p199, %p200
    %p202 = scmp.ne.s32.totalorder %s188, %s189
    %p203 = scmp.eq.s32.totalorder %s20, 1
    %p204 = por %p202, %p203
    %p206 = scmp.ne.s32.totalorder %s189, %s205
    %p207 = scmp.eq.s32.totalorder %s20, 0
    %p208 = por %p206, %p207
    %s209 = ssub.s32 %s21, %s33
    %s210 = ssub.s32 %s22, %s29
    %s211 = sor.u32 %s209, %s210
    %p212 = scmp.eq.s32.totalorder %s211, 0
    %s214 = sadd.s32 %s213, 1
    %s215 = scalar_select %p212, %s213, %s214
    %p218 = pneg %p212
    %p219 = scmp.eq.s32.totalorder %s14, 1
    %p220 = por %p218, %p219
    %p221 = scmp.ne.s32.totalorder %s213, %s216
    %p222 = scmp.eq.s32.totalorder %s14, 0
    %p223 = por %p221, %p222
    %p224 = scmp.ne.s32.totalorder %s213, %s216
    %p225 = scmp.eq.s32.totalorder %s19, 1
    %p226 = por %p224, %p225
    %p227 = scmp.ne.s32.totalorder %s216, %s217
    %p228 = scmp.eq.s32.totalorder %s19, 0
    %p229 = por %p227, %p228
    %p230 = scmp.ne.s32.totalorder %s216, %s217
    %p231 = scmp.eq.s32.totalorder %s20, 1
    %p232 = por %p230, %p231
    %p234 = scmp.ne.s32.totalorder %s217, %s233
    %p235 = scmp.eq.s32.totalorder %s20, 0
    %p236 = por %p234, %p235
    %p237 = scmp.le.s32.totalorder 1, %s14
    %p238 = scmp.lt.s32.totalorder %s14, 3
    %p239 = pnand %p237, %p238
    %p240 = pneg %p239
    // Predicated region
    $region9: #{vector_quantizer_ema_forward.1} parent=5 // pred_check
      _
    $region10: #{vector_quantizer_ema_forward.1} parent=5 // pred_check_branch
      %242 = sbr.rel (%p239) target = $region12
    $region11: #{vector_quantizer_ema_forward.1} parent=5 // pred_region
      %s243 = ssub.s32 %s14, 1
      // Predicated region
      $region13: #{vector_quantizer_ema_forward.1} parent=11 // pred_check
        %p244 = pneg %p75
      $region14: #{vector_quantizer_ema_forward.1} parent=11 // pred_check_branch
        %246 = sbr.rel (%p244) target = $region16
      $region15: #{vector_quantizer_ema_forward.1} parent=11 // pred_region
        _
      $region16: #{vector_quantizer_ema_forward.1} parent=11 // pred_fallthru
        _
      // Predicated region
      $region17: #{vector_quantizer_ema_forward.1} parent=11 // pred_check
        %p247 = pneg %p96
      $region18: #{vector_quantizer_ema_forward.1} parent=11 // pred_check_branch
        %249 = sbr.rel (%p247) target = $region20
      $region19: #{vector_quantizer_ema_forward.1} parent=11 // pred_region
        _
      $region20: #{vector_quantizer_ema_forward.1} parent=11 // pred_fallthru
        _
      // Predicated region
      $region21: #{vector_quantizer_ema_forward.1} parent=11 // pred_check
        %p250 = pneg %p117
      $region22: #{vector_quantizer_ema_forward.1} parent=11 // pred_check_branch
        %252 = sbr.rel (%p250) target = $region24
      $region23: #{vector_quantizer_ema_forward.1} parent=11 // pred_region
        _
      $region24: #{vector_quantizer_ema_forward.1} parent=11 // pred_fallthru
        _
    $region12: #{vector_quantizer_ema_forward.1} parent=5 // pred_fallthru
      _
    %p253 = scmp.lt.s32.totalorder %s14, 2
    // Predicated region
    $region25: #{vector_quantizer_ema_forward.1} parent=5 // pred_check
      %p254 = pneg %p253
    $region26: #{vector_quantizer_ema_forward.1} parent=5 // pred_check_branch
      %256 = sbr.rel (%p254) target = $region28
    $region27: #{vector_quantizer_ema_forward.1} parent=5 // pred_region
      // Predicated region
      $region29: #{vector_quantizer_ema_forward.1} parent=27 // pred_check
        %p257 = pneg %p48
      $region30: #{vector_quantizer_ema_forward.1} parent=27 // pred_check_branch
        %259 = sbr.rel (%p257) target = $region32
      $region31: #{vector_quantizer_ema_forward.1} parent=27 // pred_region
        %s260 = smul.u32 8, %s22
        %p261 = scmp.lt.s32.totalorder %s21, 1
        %s262 = scalar_select %p261, %s21, 1
        %p263 = scmp.lt.s32.totalorder %s260, 7
        %s264 = scalar_select %p263, %s260, 7
        %s265 = smul.addr %s262, 8
        %s266 = sadd.s32 %s264, %s265
        %s267 = smul.addr %s266, 8
        %s268 = scalar_lea.vmem %s0, %s267
        %s269 = smul.u32 8, %s22
      $region32: #{vector_quantizer_ema_forward.1} parent=27 // pred_fallthru
        _
    $region28: #{vector_quantizer_ema_forward.1} parent=5 // pred_fallthru
      _
    %p270 = scmp.le.s32.totalorder 1, %s14
    %p271 = scmp.lt.s32.totalorder %s14, 3
    %p272 = pnand %p270, %p271
    %p273 = pneg %p272
    // Predicated region
    $region33: #{vector_quantizer_ema_forward.1} parent=5 // pred_check
      _
    $region34: #{vector_quantizer_ema_forward.1} parent=5 // pred_check_branch
      %275 = sbr.rel (%p272) target = $region36
    $region35: #{vector_quantizer_ema_forward.1} parent=5 // pred_region
      %s276 = ssub.s32 %s14, 1
      %s277 = smul.u32 8, %s24
      %p278 = scmp.lt.s32.totalorder %s23, 1
      %s279 = scalar_select %p278, %s23, 1
      %p280 = scmp.lt.s32.totalorder %s277, 7
      %s281 = scalar_select %p280, %s277, 7
      %s282 = smul.addr %s279, 8
      %s283 = sadd.s32 %s281, %s282
      %s284 = smul.addr %s283, 8
      %s285 = scalar_lea.vmem %s0, %s284
      %p286 = pneg %p54
      %p287 = pneg %p51
      %p288 = pneg %p75
      %p289 = pneg %p72
      %p290 = pneg %p96
      %p291 = pneg %p93
      %p292 = pneg %p117
      %p293 = pneg %p114
      %p294 = pneg %p145
      %p295 = pneg %p142
      %s296 = smul.u32 8, %s24
      %p297 = scmp.lt.s32.totalorder %s23, 1
      %s298 = scalar_select %p297, %s23, 1
      %p299 = scmp.lt.s32.totalorder %s296, 7
      %s300 = scalar_select %p299, %s296, 7
      %s301 = smul.addr %s298, 8
      %s302 = sadd.s32 %s300, %s301
      %s303 = smul.addr %s302, 8
      %s304 = scalar_lea.vmem %s4, %s303
      %p305 = pneg %p173
      %p306 = pneg %p170
      %s307 = smul.u32 8, %s24
      %p308 = scmp.lt.s32.totalorder %s23, 1
      %s309 = scalar_select %p308, %s23, 1
      %p310 = scmp.lt.s32.totalorder %s307, 7
      %s311 = scalar_select %p310, %s307, 7
      %s312 = smul.addr %s309, 8
      %s313 = sadd.s32 %s311, %s312
      %s314 = scalar_lea.vmem %s5, %s313
      %p315 = pneg %p201
      %p316 = pneg %p198
      %p317 = scmp.lt.s32.totalorder %s23, 1
      %s318 = scalar_select %p317, %s23, 1
      %p319 = scmp.lt.s32.totalorder %s24, 0
      %s320 = scalar_select %p319, %s24, 0
      %s321 = smul.addr %s320, 2
      %s322 = smul.addr %s318, 2
      %s323 = sadd.s32 %s321, %s322
      %s324 = smul.addr %s323, 8
      %s325 = scalar_lea.vmem %s6, %s324
      %p326 = pneg %p229
      %p327 = pneg %p226
      %p328 = scmp.lt.s32.totalorder %s23, 1
      %s329 = scalar_select %p328, %s23, 1
      %p330 = scmp.lt.s32.totalorder %s24, 0
      %s331 = scalar_select %p330, %s24, 0
      %s332 = sadd.s32 %s331, %s329
      %s333 = scalar_lea.vmem %s7, %s332
      %s334 = smul.u32 8, %s24
      %p335 = scmp.lt.s32.totalorder %s23, 1
      %s336 = scalar_select %p335, %s23, 1
      %p337 = scmp.lt.s32.totalorder %s334, 7
      %s338 = scalar_select %p337, %s334, 7
      %s339 = smul.addr %s336, 8
      %s340 = sadd.s32 %s338, %s339
      %s341 = smul.addr %s340, 8
      %s342 = scalar_lea.vmem %s0, %s341
      %s343 = smul.u32 8, %s24
      %s344 = smul.u32 8, %s24
      %p345 = scmp.lt.s32.totalorder %s23, 1
      %s346 = scalar_select %p345, %s23, 1
      %p347 = scmp.lt.s32.totalorder %s344, 7
      %s348 = scalar_select %p347, %s344, 7
      %s349 = smul.addr %s346, 8
      %s350 = sadd.s32 %s348, %s349
      %s351 = smul.addr %s350, 8
      %s352 = scalar_lea.vmem %s4, %s351
      %s353 = smul.u32 8, %s24
      %s354 = smul.u32 8, %s24
      %p355 = scmp.lt.s32.totalorder %s23, 1
      %s356 = scalar_select %p355, %s23, 1
      %p357 = scmp.lt.s32.totalorder %s354, 7
      %s358 = scalar_select %p357, %s354, 7
      %s359 = smul.addr %s356, 8
      %s360 = sadd.s32 %s358, %s359
      %s361 = scalar_lea.vmem %s5, %s360
      %s362 = smul.u32 8, %s24
      %p363 = scmp.lt.s32.totalorder %s23, 1
      %s364 = scalar_select %p363, %s23, 1
      %p365 = scmp.lt.s32.totalorder %s24, 0
      %s366 = scalar_select %p365, %s24, 0
      %s367 = smul.addr %s366, 2
      %s368 = smul.addr %s364, 2
      %s369 = sadd.s32 %s367, %s368
      %s370 = smul.addr %s369, 8
      %s371 = scalar_lea.vmem %s6, %s370
      %p372 = scmp.lt.s32.totalorder %s23, 1
      %s373 = scalar_select %p372, %s23, 1
      %p374 = scmp.lt.s32.totalorder %s24, 0
      %s375 = scalar_select %p374, %s24, 0
      %s376 = sadd.s32 %s375, %s373
      %s377 = scalar_lea.vmem %s7, %s376
      %v378 = vld [vmem:[%s342] sm:$0xff]
      %v379 = vld [vmem:[%s342 + $0x8] sm:$0xff]
      %v380 = vld [vmem:[%s342 + $0x10] sm:$0xff]
      %v381 = vld [vmem:[%s342 + $0x18] sm:$0xff]
      %v382 = vld [vmem:[%s342 + $0x20] sm:$0xff]
      %v383 = vld [vmem:[%s342 + $0x28] sm:$0xff]
      %v384 = vld [vmem:[%s342 + $0x30] sm:$0xff]
      %v385 = vld [vmem:[%s342 + $0x38] sm:$0xff]
      %v386 = vld [vmem:[%s1] sm:$0xff]
      %v387 = vld [vmem:[%s1 + $0x8] sm:$0xff]
      %v388 = vld [vmem:[%s2] sm:$0xff]
      %v389 = vld [vmem:[%s3] sm:$0xff]
      %v390 = vld [vmem:[%s3 + $0x8] sm:$0xff]
      %vm391 = vcmask 64512
      %v393 = vsel %vm391, %v386, 0
      %v396 = vsel %vm391, %v387, 0
      %398 = vmatpush.msra.mxu0 0.0
      %399 = vmatpush.msra.mxu0 0.0
      %400 = vmatpush.msra.mxu0 0.0
      %401 = vmatpush.msra.mxu0 0.0
      %402 = vmatpush.msra.mxu0 0.0
      %403 = vmatpush.msra.mxu0 0.0
      %404 = vmatpush.msra.mxu0 0.0
      %405 = vmatpush.msra.mxu0 0.0
      %406 = vmatpush.msra.mxu0 0.0
      %407 = vmatpush.msra.mxu0 0.0
      %408 = vmatpush.msra.mxu0 0.0
      %409 = vmatpush.msra.mxu0 0.0
      %410 = vmatpush.msra.mxu0 0.0
      %411 = vmatpush.msra.mxu0 0.0
      %412 = vmatpush.msra.mxu0 0.0
      %413 = vmatpush.msra.mxu0 %v378
      %414 = vmatmul.f32.gmra.mxu0 %v393
      %v415 = vpop.f32.mrf.mxu0
      %v416 = vadd.f32 0.0, %v415
      %417 = vmatmul.f32.gmra.mxu0 %v396
      %v418 = vpop.f32.mrf.mxu0
      %v419 = vadd.f32 0.0, %v418
      %420 = vdwg.mxu0
      %421 = vmatpush.msra.mxu0 0.0
      %422 = vmatpush.msra.mxu0 0.0
      %423 = vmatpush.msra.mxu0 0.0
      %424 = vmatpush.msra.mxu0 0.0
      %425 = vmatpush.msra.mxu0 0.0
      %426 = vmatpush.msra.mxu0 0.0
      %427 = vmatpush.msra.mxu0 0.0
      %428 = vmatpush.msra.mxu0 0.0
      %429 = vmatpush.msra.mxu0 0.0
      %430 = vmatpush.msra.mxu0 0.0
      %431 = vmatpush.msra.mxu0 0.0
      %432 = vmatpush.msra.mxu0 0.0
      %433 = vmatpush.msra.mxu0 0.0
      %434 = vmatpush.msra.mxu0 0.0
      %435 = vmatpush.msra.mxu0 0.0
      %436 = vmatpush.msra.mxu0 %v379
      %437 = vmatmul.f32.gmra.mxu0 %v393
      %v438 = vpop.f32.mrf.mxu0
      %v439 = vadd.f32 0.0, %v438
      %440 = vmatmul.f32.gmra.mxu0 %v396
      %v441 = vpop.f32.mrf.mxu0
      %v442 = vadd.f32 0.0, %v441
      %443 = vdwg.mxu0
      %444 = vmatpush.msra.mxu0 0.0
      %445 = vmatpush.msra.mxu0 0.0
      %446 = vmatpush.msra.mxu0 0.0
      %447 = vmatpush.msra.mxu0 0.0
      %448 = vmatpush.msra.mxu0 0.0
      %449 = vmatpush.msra.mxu0 0.0
      %450 = vmatpush.msra.mxu0 0.0
      %451 = vmatpush.msra.mxu0 0.0
      %452 = vmatpush.msra.mxu0 0.0
      %453 = vmatpush.msra.mxu0 0.0
      %454 = vmatpush.msra.mxu0 0.0
      %455 = vmatpush.msra.mxu0 0.0
      %456 = vmatpush.msra.mxu0 0.0
      %457 = vmatpush.msra.mxu0 0.0
      %458 = vmatpush.msra.mxu0 0.0
      %459 = vmatpush.msra.mxu0 %v380
      %460 = vmatmul.f32.gmra.mxu0 %v393
      %v461 = vpop.f32.mrf.mxu0
      %v462 = vadd.f32 0.0, %v461
      %463 = vmatmul.f32.gmra.mxu0 %v396
      %v464 = vpop.f32.mrf.mxu0
      %v465 = vadd.f32 0.0, %v464
      %466 = vdwg.mxu0
      %467 = vmatpush.msra.mxu0 0.0
      %468 = vmatpush.msra.mxu0 0.0
      %469 = vmatpush.msra.mxu0 0.0
      %470 = vmatpush.msra.mxu0 0.0
      %471 = vmatpush.msra.mxu0 0.0
      %472 = vmatpush.msra.mxu0 0.0
      %473 = vmatpush.msra.mxu0 0.0
      %474 = vmatpush.msra.mxu0 0.0
      %475 = vmatpush.msra.mxu0 0.0
      %476 = vmatpush.msra.mxu0 0.0
      %477 = vmatpush.msra.mxu0 0.0
      %478 = vmatpush.msra.mxu0 0.0
      %479 = vmatpush.msra.mxu0 0.0
      %480 = vmatpush.msra.mxu0 0.0
      %481 = vmatpush.msra.mxu0 0.0
      %482 = vmatpush.msra.mxu0 %v381
      %483 = vmatmul.f32.gmra.mxu0 %v393
      %v484 = vpop.f32.mrf.mxu0
      %v485 = vadd.f32 0.0, %v484
      %486 = vmatmul.f32.gmra.mxu0 %v396
      %v487 = vpop.f32.mrf.mxu0
      %v488 = vadd.f32 0.0, %v487
      %489 = vdwg.mxu0
      %490 = vmatpush.msra.mxu0 0.0
      %491 = vmatpush.msra.mxu0 0.0
      %492 = vmatpush.msra.mxu0 0.0
      %493 = vmatpush.msra.mxu0 0.0
      %494 = vmatpush.msra.mxu0 0.0
      %495 = vmatpush.msra.mxu0 0.0
      %496 = vmatpush.msra.mxu0 0.0
      %497 = vmatpush.msra.mxu0 0.0
      %498 = vmatpush.msra.mxu0 0.0
      %499 = vmatpush.msra.mxu0 0.0
      %500 = vmatpush.msra.mxu0 0.0
      %501 = vmatpush.msra.mxu0 0.0
      %502 = vmatpush.msra.mxu0 0.0
      %503 = vmatpush.msra.mxu0 0.0
      %504 = vmatpush.msra.mxu0 0.0
      %505 = vmatpush.msra.mxu0 %v382
      %506 = vmatmul.f32.gmra.mxu0 %v393
      %v507 = vpop.f32.mrf.mxu0
      %v508 = vadd.f32 0.0, %v507
      %509 = vmatmul.f32.gmra.mxu0 %v396
      %v510 = vpop.f32.mrf.mxu0
      %v511 = vadd.f32 0.0, %v510
      %512 = vdwg.mxu0
      %513 = vmatpush.msra.mxu0 0.0
      %514 = vmatpush.msra.mxu0 0.0
      %515 = vmatpush.msra.mxu0 0.0
      %516 = vmatpush.msra.mxu0 0.0
      %517 = vmatpush.msra.mxu0 0.0
      %518 = vmatpush.msra.mxu0 0.0
      %519 = vmatpush.msra.mxu0 0.0
      %520 = vmatpush.msra.mxu0 0.0
      %521 = vmatpush.msra.mxu0 0.0
      %522 = vmatpush.msra.mxu0 0.0
      %523 = vmatpush.msra.mxu0 0.0
      %524 = vmatpush.msra.mxu0 0.0
      %525 = vmatpush.msra.mxu0 0.0
      %526 = vmatpush.msra.mxu0 0.0
      %527 = vmatpush.msra.mxu0 0.0
      %528 = vmatpush.msra.mxu0 %v383
      %529 = vmatmul.f32.gmra.mxu0 %v393
      %v530 = vpop.f32.mrf.mxu0
      %v531 = vadd.f32 0.0, %v530
      %532 = vmatmul.f32.gmra.mxu0 %v396
      %v533 = vpop.f32.mrf.mxu0
      %v534 = vadd.f32 0.0, %v533
      %535 = vdwg.mxu0
      %536 = vmatpush.msra.mxu0 0.0
      %537 = vmatpush.msra.mxu0 0.0
      %538 = vmatpush.msra.mxu0 0.0
      %539 = vmatpush.msra.mxu0 0.0
      %540 = vmatpush.msra.mxu0 0.0
      %541 = vmatpush.msra.mxu0 0.0
      %542 = vmatpush.msra.mxu0 0.0
      %543 = vmatpush.msra.mxu0 0.0
      %544 = vmatpush.msra.mxu0 0.0
      %545 = vmatpush.msra.mxu0 0.0
      %546 = vmatpush.msra.mxu0 0.0
      %547 = vmatpush.msra.mxu0 0.0
      %548 = vmatpush.msra.mxu0 0.0
      %549 = vmatpush.msra.mxu0 0.0
      %550 = vmatpush.msra.mxu0 0.0
      %551 = vmatpush.msra.mxu0 %v384
      %552 = vmatmul.f32.gmra.mxu0 %v393
      %v553 = vpop.f32.mrf.mxu0
      %v554 = vadd.f32 0.0, %v553
      %555 = vmatmul.f32.gmra.mxu0 %v396
      %v556 = vpop.f32.mrf.mxu0
      %v557 = vadd.f32 0.0, %v556
      %558 = vdwg.mxu0
      %559 = vmatpush.msra.mxu0 0.0
      %560 = vmatpush.msra.mxu0 0.0
      %561 = vmatpush.msra.mxu0 0.0
      %562 = vmatpush.msra.mxu0 0.0
      %563 = vmatpush.msra.mxu0 0.0
      %564 = vmatpush.msra.mxu0 0.0
      %565 = vmatpush.msra.mxu0 0.0
      %566 = vmatpush.msra.mxu0 0.0
      %567 = vmatpush.msra.mxu0 0.0
      %568 = vmatpush.msra.mxu0 0.0
      %569 = vmatpush.msra.mxu0 0.0
      %570 = vmatpush.msra.mxu0 0.0
      %571 = vmatpush.msra.mxu0 0.0
      %572 = vmatpush.msra.mxu0 0.0
      %573 = vmatpush.msra.mxu0 0.0
      %574 = vmatpush.msra.mxu0 %v385
      %575 = vmatmul.f32.gmra.mxu0 %v393
      %v576 = vpop.f32.mrf.mxu0
      %v577 = vadd.f32 0.0, %v576
      %578 = vmatmul.f32.gmra.mxu0 %v396
      %v579 = vpop.f32.mrf.mxu0
      %v580 = vadd.f32 0.0, %v579
      %581 = vdwg.mxu0
      %583 = vset.pattern.permute.xlu0 0
      %584 = vperm.xlu0 %583, %v389
      %v585 = vpop.permute.xlu0 %584
      %588 = vset.pattern.permute.xlu0 0
      %589 = vperm.xlu0 %588, %v390
      %v590 = vpop.permute.xlu0 %589
      %v592 = vsub.f32 %v585, %v416
      %v593 = vsub.f32 %v585, %v439
      %v594 = vsub.f32 %v585, %v462
      %v595 = vsub.f32 %v585, %v485
      %v596 = vsub.f32 %v585, %v508
      %v597 = vsub.f32 %v585, %v531
      %v598 = vsub.f32 %v585, %v554
      %v599 = vsub.f32 %v585, %v577
      %v600 = vsub.f32 %v590, %v419
      %v601 = vsub.f32 %v590, %v442
      %v602 = vsub.f32 %v590, %v465
      %v603 = vsub.f32 %v590, %v488
      %v604 = vsub.f32 %v590, %v511
      %v605 = vsub.f32 %v590, %v534
      %v606 = vsub.f32 %v590, %v557
      %v607 = vsub.f32 %v590, %v580
      %v608 = vlaneseq
      %v609 = vshrl.u32 %v608, 7
      %v610 = vadd.s32 %v609, 8
      %v611 = vmin.f32 %v592, %v600
      %v612 = vrot.slane %v611, 4
      %v613 = vmin.f32 %v611, %v612
      %v614 = vrot.slane %v613, 2
      %v615 = vmin.f32 %v613, %v614
      %v616 = vrot.slane %v615, 1
      %v617 = vmin.f32 %v615, %v616
      %v618 = vmin.f32 %v593, %v601
      %v619 = vrot.slane %v618, 4
      %v620 = vmin.f32 %v618, %v619
      %v621 = vrot.slane %v620, 2
      %v622 = vmin.f32 %v620, %v621
      %v623 = vrot.slane %v622, 1
      %v624 = vmin.f32 %v622, %v623
      %v625 = vmin.f32 %v594, %v602
      %v626 = vrot.slane %v625, 4
      %v627 = vmin.f32 %v625, %v626
      %v628 = vrot.slane %v627, 2
      %v629 = vmin.f32 %v627, %v628
      %v630 = vrot.slane %v629, 1
      %v631 = vmin.f32 %v629, %v630
      %v632 = vmin.f32 %v595, %v603
      %v633 = vrot.slane %v632, 4
      %v634 = vmin.f32 %v632, %v633
      %v635 = vrot.slane %v634, 2
      %v636 = vmin.f32 %v634, %v635
      %v637 = vrot.slane %v636, 1
      %v638 = vmin.f32 %v636, %v637
      %v639 = vmin.f32 %v596, %v604
      %v640 = vrot.slane %v639, 4
      %v641 = vmin.f32 %v639, %v640
      %v642 = vrot.slane %v641, 2
      %v643 = vmin.f32 %v641, %v642
      %v644 = vrot.slane %v643, 1
      %v645 = vmin.f32 %v643, %v644
      %v646 = vmin.f32 %v597, %v605
      %v647 = vrot.slane %v646, 4
      %v648 = vmin.f32 %v646, %v647
      %v649 = vrot.slane %v648, 2
      %v650 = vmin.f32 %v648, %v649
      %v651 = vrot.slane %v650, 1
      %v652 = vmin.f32 %v650, %v651
      %v653 = vmin.f32 %v598, %v606
      %v654 = vrot.slane %v653, 4
      %v655 = vmin.f32 %v653, %v654
      %v656 = vrot.slane %v655, 2
      %v657 = vmin.f32 %v655, %v656
      %v658 = vrot.slane %v657, 1
      %v659 = vmin.f32 %v657, %v658
      %v660 = vmin.f32 %v599, %v607
      %v661 = vrot.slane %v660, 4
      %v662 = vmin.f32 %v660, %v661
      %v663 = vrot.slane %v662, 2
      %v664 = vmin.f32 %v662, %v663
      %v665 = vrot.slane %v664, 1
      %v666 = vmin.f32 %v664, %v665
      %vm667 = vcmp.eq.f32.partialorder %v592, %v617
      %vm668 = vcmp.eq.f32.partialorder %v593, %v624
      %vm669 = vcmp.eq.f32.partialorder %v594, %v631
      %vm670 = vcmp.eq.f32.partialorder %v595, %v638
      %vm671 = vcmp.eq.f32.partialorder %v596, %v645
      %vm672 = vcmp.eq.f32.partialorder %v597, %v652
      %vm673 = vcmp.eq.f32.partialorder %v598, %v659
      %vm674 = vcmp.eq.f32.partialorder %v599, %v666
      %vm675 = vcmp.eq.f32.partialorder %v600, %v617
      %vm676 = vcmp.eq.f32.partialorder %v601, %v624
      %vm677 = vcmp.eq.f32.partialorder %v602, %v631
      %vm678 = vcmp.eq.f32.partialorder %v603, %v638
      %vm679 = vcmp.eq.f32.partialorder %v604, %v645
      %vm680 = vcmp.eq.f32.partialorder %v605, %v652
      %vm681 = vcmp.eq.f32.partialorder %v606, %v659
      %vm682 = vcmp.eq.f32.partialorder %v607, %v666
      %v683 = vsel %vm667, %v609, 16
      %v684 = vsel %vm668, %v609, 16
      %v685 = vsel %vm669, %v609, 16
      %v686 = vsel %vm670, %v609, 16
      %v687 = vsel %vm671, %v609, 16
      %v688 = vsel %vm672, %v609, 16
      %v689 = vsel %vm673, %v609, 16
      %v690 = vsel %vm674, %v609, 16
      %v691 = vsel %vm675, %v610, 16
      %v692 = vsel %vm676, %v610, 16
      %v693 = vsel %vm677, %v610, 16
      %v694 = vsel %vm678, %v610, 16
      %v695 = vsel %vm679, %v610, 16
      %v696 = vsel %vm680, %v610, 16
      %v697 = vsel %vm681, %v610, 16
      %v698 = vsel %vm682, %v610, 16
      %vm699 = vcmp.lt.s32.totalorder %v683, %v691
      %v700 = vsel %vm699, %v683, %v691
      %v701 = vrot.slane %v700, 4
      %vm702 = vcmp.lt.s32.totalorder %v700, %v701
      %v703 = vsel %vm702, %v700, %v701
      %v704 = vrot.slane %v703, 2
      %vm705 = vcmp.lt.s32.totalorder %v703, %v704
      %v706 = vsel %vm705, %v703, %v704
      %v707 = vrot.slane %v706, 1
      %vm708 = vcmp.lt.s32.totalorder %v706, %v707
      %v709 = vsel %vm708, %v706, %v707
      %vm710 = vcmp.lt.s32.totalorder %v684, %v692
      %v711 = vsel %vm710, %v684, %v692
      %v712 = vrot.slane %v711, 4
      %vm713 = vcmp.lt.s32.totalorder %v711, %v712
      %v714 = vsel %vm713, %v711, %v712
      %v715 = vrot.slane %v714, 2
      %vm716 = vcmp.lt.s32.totalorder %v714, %v715
      %v717 = vsel %vm716, %v714, %v715
      %v718 = vrot.slane %v717, 1
      %vm719 = vcmp.lt.s32.totalorder %v717, %v718
      %v720 = vsel %vm719, %v717, %v718
      %vm721 = vcmp.lt.s32.totalorder %v685, %v693
      %v722 = vsel %vm721, %v685, %v693
      %v723 = vrot.slane %v722, 4
      %vm724 = vcmp.lt.s32.totalorder %v722, %v723
      %v725 = vsel %vm724, %v722, %v723
      %v726 = vrot.slane %v725, 2
      %vm727 = vcmp.lt.s32.totalorder %v725, %v726
      %v728 = vsel %vm727, %v725, %v726
      %v729 = vrot.slane %v728, 1
      %vm730 = vcmp.lt.s32.totalorder %v728, %v729
      %v731 = vsel %vm730, %v728, %v729
      %vm732 = vcmp.lt.s32.totalorder %v686, %v694
      %v733 = vsel %vm732, %v686, %v694
      %v734 = vrot.slane %v733, 4
      %vm735 = vcmp.lt.s32.totalorder %v733, %v734
      %v736 = vsel %vm735, %v733, %v734
      %v737 = vrot.slane %v736, 2
      %vm738 = vcmp.lt.s32.totalorder %v736, %v737
      %v739 = vsel %vm738, %v736, %v737
      %v740 = vrot.slane %v739, 1
      %vm741 = vcmp.lt.s32.totalorder %v739, %v740
      %v742 = vsel %vm741, %v739, %v740
      %vm743 = vcmp.lt.s32.totalorder %v687, %v695
      %v744 = vsel %vm743, %v687, %v695
      %v745 = vrot.slane %v744, 4
      %vm746 = vcmp.lt.s32.totalorder %v744, %v745
      %v747 = vsel %vm746, %v744, %v745
      %v748 = vrot.slane %v747, 2
      %vm749 = vcmp.lt.s32.totalorder %v747, %v748
      %v750 = vsel %vm749, %v747, %v748
      %v751 = vrot.slane %v750, 1
      %vm752 = vcmp.lt.s32.totalorder %v750, %v751
      %v753 = vsel %vm752, %v750, %v751
      %vm754 = vcmp.lt.s32.totalorder %v688, %v696
      %v755 = vsel %vm754, %v688, %v696
      %v756 = vrot.slane %v755, 4
      %vm757 = vcmp.lt.s32.totalorder %v755, %v756
      %v758 = vsel %vm757, %v755, %v756
      %v759 = vrot.slane %v758, 2
      %vm760 = vcmp.lt.s32.totalorder %v758, %v759
      %v761 = vsel %vm760, %v758, %v759
      %v762 = vrot.slane %v761, 1
      %vm763 = vcmp.lt.s32.totalorder %v761, %v762
      %v764 = vsel %vm763, %v761, %v762
      %vm765 = vcmp.lt.s32.totalorder %v689, %v697
      %v766 = vsel %vm765, %v689, %v697
      %v767 = vrot.slane %v766, 4
      %vm768 = vcmp.lt.s32.totalorder %v766, %v767
      %v769 = vsel %vm768, %v766, %v767
      %v770 = vrot.slane %v769, 2
      %vm771 = vcmp.lt.s32.totalorder %v769, %v770
      %v772 = vsel %vm771, %v769, %v770
      %v773 = vrot.slane %v772, 1
      %vm774 = vcmp.lt.s32.totalorder %v772, %v773
      %v775 = vsel %vm774, %v772, %v773
      %vm776 = vcmp.lt.s32.totalorder %v690, %v698
      %v777 = vsel %vm776, %v690, %v698
      %v778 = vrot.slane %v777, 4
      %vm779 = vcmp.lt.s32.totalorder %v777, %v778
      %v780 = vsel %vm779, %v777, %v778
      %v781 = vrot.slane %v780, 2
      %vm782 = vcmp.lt.s32.totalorder %v780, %v781
      %v783 = vsel %vm782, %v780, %v781
      %v784 = vrot.slane %v783, 1
      %vm785 = vcmp.lt.s32.totalorder %v783, %v784
      %v786 = vsel %vm785, %v783, %v784
      %vm787 = vcmp.eq.s32.totalorder %v609, %v709
      %vm788 = vcmp.eq.s32.totalorder %v609, %v720
      %vm789 = vcmp.eq.s32.totalorder %v609, %v731
      %vm790 = vcmp.eq.s32.totalorder %v609, %v742
      %vm791 = vcmp.eq.s32.totalorder %v609, %v753
      %vm792 = vcmp.eq.s32.totalorder %v609, %v764
      %vm793 = vcmp.eq.s32.totalorder %v609, %v775
      %vm794 = vcmp.eq.s32.totalorder %v609, %v786
      %vm795 = vcmp.eq.s32.totalorder %v610, %v709
      %vm796 = vcmp.eq.s32.totalorder %v610, %v720
      %vm797 = vcmp.eq.s32.totalorder %v610, %v731
      %vm798 = vcmp.eq.s32.totalorder %v610, %v742
      %vm799 = vcmp.eq.s32.totalorder %v610, %v753
      %vm800 = vcmp.eq.s32.totalorder %v610, %v764
      %vm801 = vcmp.eq.s32.totalorder %v610, %v775
      %vm802 = vcmp.eq.s32.totalorder %v610, %v786
      %v803 = vsel %vm787, 1, 0
      %v804 = vsel %vm788, 1, 0
      %v805 = vsel %vm789, 1, 0
      %v806 = vsel %vm790, 1, 0
      %v807 = vsel %vm791, 1, 0
      %v808 = vsel %vm792, 1, 0
      %v809 = vsel %vm793, 1, 0
      %v810 = vsel %vm794, 1, 0
      %v811 = vsel %vm795, 1, 0
      %v812 = vsel %vm796, 1, 0
      %v813 = vsel %vm797, 1, 0
      %v814 = vsel %vm798, 1, 0
      %v815 = vsel %vm799, 1, 0
      %v816 = vsel %vm800, 1, 0
      %v817 = vsel %vm801, 1, 0
      %v818 = vsel %vm802, 1, 0
      %v819 = vcvt.s32.f32 %v803
      %v820 = vcvt.s32.f32 %v804
      %v821 = vcvt.s32.f32 %v805
      %v822 = vcvt.s32.f32 %v806
      %v823 = vcvt.s32.f32 %v807
      %v824 = vcvt.s32.f32 %v808
      %v825 = vcvt.s32.f32 %v809
      %v826 = vcvt.s32.f32 %v810
      %v827 = vcvt.s32.f32 %v811
      %v828 = vcvt.s32.f32 %v812
      %v829 = vcvt.s32.f32 %v813
      %v830 = vcvt.s32.f32 %v814
      %v831 = vcvt.s32.f32 %v815
      %v832 = vcvt.s32.f32 %v816
      %v833 = vcvt.s32.f32 %v817
      %v834 = vcvt.s32.f32 %v818
      %vm835 = vcmask 130048
      %v837 = vsel %vm835, %v388, 0
      %839 = vmatpush.msra.mxu0 0.0
      %840 = vmatpush.msra.mxu0 0.0
      %841 = vmatpush.msra.mxu0 0.0
      %842 = vmatpush.msra.mxu0 0.0
      %843 = vmatpush.msra.mxu0 0.0
      %844 = vmatpush.msra.mxu0 0.0
      %845 = vmatpush.msra.mxu0 0.0
      %846 = vmatpush.msra.mxu0 0.0
      %847 = vmatpush.msra.mxu0 0.0
      %848 = vmatpush.msra.mxu0 0.0
      %849 = vmatpush.msra.mxu0 0.0
      %850 = vmatpush.msra.mxu0 0.0
      %851 = vmatpush.msra.mxu0 0.0
      %852 = vmatpush.msra.mxu0 0.0
      %853 = vmatpush.msra.mxu0 %v827
      %854 = vmatpush.msra.mxu0 %v819
      %855 = vmatmul.f32.gmra.mxu0 %v837
      %v856 = vpop.f32.mrf.mxu0
      %v857 = vadd.f32 0.0, %v856
      %858 = vdwg.mxu0
      %859 = vmatpush.msra.mxu0 0.0
      %860 = vmatpush.msra.mxu0 0.0
      %861 = vmatpush.msra.mxu0 0.0
      %862 = vmatpush.msra.mxu0 0.0
      %863 = vmatpush.msra.mxu0 0.0
      %864 = vmatpush.msra.mxu0 0.0
      %865 = vmatpush.msra.mxu0 0.0
      %866 = vmatpush.msra.mxu0 0.0
      %867 = vmatpush.msra.mxu0 0.0
      %868 = vmatpush.msra.mxu0 0.0
      %869 = vmatpush.msra.mxu0 0.0
      %870 = vmatpush.msra.mxu0 0.0
      %871 = vmatpush.msra.mxu0 0.0
      %872 = vmatpush.msra.mxu0 0.0
      %873 = vmatpush.msra.mxu0 %v828
      %874 = vmatpush.msra.mxu0 %v820
      %875 = vmatmul.f32.gmra.mxu0 %v837
      %v876 = vpop.f32.mrf.mxu0
      %v877 = vadd.f32 0.0, %v876
      %878 = vdwg.mxu0
      %879 = vmatpush.msra.mxu0 0.0
      %880 = vmatpush.msra.mxu0 0.0
      %881 = vmatpush.msra.mxu0 0.0
      %882 = vmatpush.msra.mxu0 0.0
      %883 = vmatpush.msra.mxu0 0.0
      %884 = vmatpush.msra.mxu0 0.0
      %885 = vmatpush.msra.mxu0 0.0
      %886 = vmatpush.msra.mxu0 0.0
      %887 = vmatpush.msra.mxu0 0.0
      %888 = vmatpush.msra.mxu0 0.0
      %889 = vmatpush.msra.mxu0 0.0
      %890 = vmatpush.msra.mxu0 0.0
      %891 = vmatpush.msra.mxu0 0.0
      %892 = vmatpush.msra.mxu0 0.0
      %893 = vmatpush.msra.mxu0 %v829
      %894 = vmatpush.msra.mxu0 %v821
      %895 = vmatmul.f32.gmra.mxu0 %v837
      %v896 = vpop.f32.mrf.mxu0
      %v897 = vadd.f32 0.0, %v896
      %898 = vdwg.mxu0
      %899 = vmatpush.msra.mxu0 0.0
      %900 = vmatpush.msra.mxu0 0.0
      %901 = vmatpush.msra.mxu0 0.0
      %902 = vmatpush.msra.mxu0 0.0
      %903 = vmatpush.msra.mxu0 0.0
      %904 = vmatpush.msra.mxu0 0.0
      %905 = vmatpush.msra.mxu0 0.0
      %906 = vmatpush.msra.mxu0 0.0
      %907 = vmatpush.msra.mxu0 0.0
      %908 = vmatpush.msra.mxu0 0.0
      %909 = vmatpush.msra.mxu0 0.0
      %910 = vmatpush.msra.mxu0 0.0
      %911 = vmatpush.msra.mxu0 0.0
      %912 = vmatpush.msra.mxu0 0.0
      %913 = vmatpush.msra.mxu0 %v830
      %914 = vmatpush.msra.mxu0 %v822
      %915 = vmatmul.f32.gmra.mxu0 %v837
      %v916 = vpop.f32.mrf.mxu0
      %v917 = vadd.f32 0.0, %v916
      %918 = vdwg.mxu0
      %919 = vmatpush.msra.mxu0 0.0
      %920 = vmatpush.msra.mxu0 0.0
      %921 = vmatpush.msra.mxu0 0.0
      %922 = vmatpush.msra.mxu0 0.0
      %923 = vmatpush.msra.mxu0 0.0
      %924 = vmatpush.msra.mxu0 0.0
      %925 = vmatpush.msra.mxu0 0.0
      %926 = vmatpush.msra.mxu0 0.0
      %927 = vmatpush.msra.mxu0 0.0
      %928 = vmatpush.msra.mxu0 0.0
      %929 = vmatpush.msra.mxu0 0.0
      %930 = vmatpush.msra.mxu0 0.0
      %931 = vmatpush.msra.mxu0 0.0
      %932 = vmatpush.msra.mxu0 0.0
      %933 = vmatpush.msra.mxu0 %v831
      %934 = vmatpush.msra.mxu0 %v823
      %935 = vmatmul.f32.gmra.mxu0 %v837
      %v936 = vpop.f32.mrf.mxu0
      %v937 = vadd.f32 0.0, %v936
      %938 = vdwg.mxu0
      %939 = vmatpush.msra.mxu0 0.0
      %940 = vmatpush.msra.mxu0 0.0
      %941 = vmatpush.msra.mxu0 0.0
      %942 = vmatpush.msra.mxu0 0.0
      %943 = vmatpush.msra.mxu0 0.0
      %944 = vmatpush.msra.mxu0 0.0
      %945 = vmatpush.msra.mxu0 0.0
      %946 = vmatpush.msra.mxu0 0.0
      %947 = vmatpush.msra.mxu0 0.0
      %948 = vmatpush.msra.mxu0 0.0
      %949 = vmatpush.msra.mxu0 0.0
      %950 = vmatpush.msra.mxu0 0.0
      %951 = vmatpush.msra.mxu0 0.0
      %952 = vmatpush.msra.mxu0 0.0
      %953 = vmatpush.msra.mxu0 %v832
      %954 = vmatpush.msra.mxu0 %v824
      %955 = vmatmul.f32.gmra.mxu0 %v837
      %v956 = vpop.f32.mrf.mxu0
      %v957 = vadd.f32 0.0, %v956
      %958 = vdwg.mxu0
      %959 = vmatpush.msra.mxu0 0.0
      %960 = vmatpush.msra.mxu0 0.0
      %961 = vmatpush.msra.mxu0 0.0
      %962 = vmatpush.msra.mxu0 0.0
      %963 = vmatpush.msra.mxu0 0.0
      %964 = vmatpush.msra.mxu0 0.0
      %965 = vmatpush.msra.mxu0 0.0
      %966 = vmatpush.msra.mxu0 0.0
      %967 = vmatpush.msra.mxu0 0.0
      %968 = vmatpush.msra.mxu0 0.0
      %969 = vmatpush.msra.mxu0 0.0
      %970 = vmatpush.msra.mxu0 0.0
      %971 = vmatpush.msra.mxu0 0.0
      %972 = vmatpush.msra.mxu0 0.0
      %973 = vmatpush.msra.mxu0 %v833
      %974 = vmatpush.msra.mxu0 %v825
      %975 = vmatmul.f32.gmra.mxu0 %v837
      %v976 = vpop.f32.mrf.mxu0
      %v977 = vadd.f32 0.0, %v976
      %978 = vdwg.mxu0
      %979 = vmatpush.msra.mxu0 0.0
      %980 = vmatpush.msra.mxu0 0.0
      %981 = vmatpush.msra.mxu0 0.0
      %982 = vmatpush.msra.mxu0 0.0
      %983 = vmatpush.msra.mxu0 0.0
      %984 = vmatpush.msra.mxu0 0.0
      %985 = vmatpush.msra.mxu0 0.0
      %986 = vmatpush.msra.mxu0 0.0
      %987 = vmatpush.msra.mxu0 0.0
      %988 = vmatpush.msra.mxu0 0.0
      %989 = vmatpush.msra.mxu0 0.0
      %990 = vmatpush.msra.mxu0 0.0
      %991 = vmatpush.msra.mxu0 0.0
      %992 = vmatpush.msra.mxu0 0.0
      %993 = vmatpush.msra.mxu0 %v834
      %994 = vmatpush.msra.mxu0 %v826
      %995 = vmatmul.f32.gmra.mxu0 %v837
      %v996 = vpop.f32.mrf.mxu0
      %v997 = vadd.f32 0.0, %v996
      %998 = vdwg.mxu0
      %v999 = vsub.f32 %v857, %v378
      %v1000 = vsub.f32 %v877, %v379
      %v1001 = vsub.f32 %v897, %v380
      %v1002 = vsub.f32 %v917, %v381
      %v1003 = vsub.f32 %v937, %v382
      %v1004 = vsub.f32 %v957, %v383
      %v1005 = vsub.f32 %v977, %v384
      %v1006 = vsub.f32 %v997, %v385
      %1007 = vst [vmem:[%s352] sm:$0xff] %v857
      %1008 = vst [vmem:[%s352 + $0x8] sm:$0xff] %v877
      %1009 = vst [vmem:[%s352 + $0x10] sm:$0xff] %v897
      %1010 = vst [vmem:[%s352 + $0x18] sm:$0xff] %v917
      %1011 = vst [vmem:[%s352 + $0x20] sm:$0xff] %v937
      %1012 = vst [vmem:[%s352 + $0x28] sm:$0xff] %v957
      %1013 = vst [vmem:[%s352 + $0x30] sm:$0xff] %v977
      %1014 = vst [vmem:[%s352 + $0x38] sm:$0xff] %v997
      %v1015 = vrot.slane %v720, 7
      %v1016 = vrot.slane %v731, 6
      %v1017 = vrot.slane %v742, 5
      %v1018 = vrot.slane %v753, 4
      %v1019 = vrot.slane %v764, 3
      %v1020 = vrot.slane %v775, 2
      %v1021 = vrot.slane %v786, 1
      %vm1022 = vcmask 1040384
      %v1023 = vsel %vm1022, %v709, %v1015
      %vm1024 = vcmask 1042434
      %v1025 = vsel %vm1024, %v1016, %v1017
      %vm1026 = vcmask 1041408
      %v1027 = vsel %vm1026, %v1023, %v1025
      %vm1028 = vcmask 1044484
      %v1029 = vsel %vm1028, %v1018, %v1019
      %vm1030 = vcmask 1046534
      %v1031 = vsel %vm1030, %v1020, %v1021
      %vm1032 = vcmask 1045508
      %v1033 = vsel %vm1032, %v1029, %v1031
      %vm1034 = vcmask 1043456
      %v1035 = vsel %vm1034, %v1027, %v1033
      %1036 = vst [vmem:[%s361] sm:$0xff] %v1035
      %v1037 = vadd.f32 %v819, %v820
      %v1038 = vadd.f32 %v1037, %v821
      %v1039 = vadd.f32 %v1038, %v822
      %v1040 = vadd.f32 %v1039, %v823
      %v1041 = vadd.f32 %v1040, %v824
      %v1042 = vadd.f32 %v1041, %v825
      %v1043 = vadd.f32 %v1042, %v826
      %1044 = vadd.xlane.f32.xlu0 %v1043
      %v1045 = vpop.xlane.xlu0 %1044
      %v1046 = vadd.f32 %v827, %v828
      %v1047 = vadd.f32 %v1046, %v829
      %v1048 = vadd.f32 %v1047, %v830
      %v1049 = vadd.f32 %v1048, %v831
      %v1050 = vadd.f32 %v1049, %v832
      %v1051 = vadd.f32 %v1050, %v833
      %v1052 = vadd.f32 %v1051, %v834
      %1053 = vadd.xlane.f32.xlu0 %v1052
      %v1054 = vpop.xlane.xlu0 %1053
      %vm1055 = vcmask 7168
      %1056 = vst.msk [vmem:[%s371] sm:$0xff] %vm1055, %v1045
      %1057 = vst.msk [vmem:[%s371 + $0x8] sm:$0xff] %vm1055, %v1054
      %v1058 = vmul.f32 %v999, %v999
      %v1059 = vmul.f32 %v1000, %v1000
      %v1060 = vmul.f32 %v1001, %v1001
      %v1061 = vmul.f32 %v1002, %v1002
      %v1062 = vmul.f32 %v1003, %v1003
      %v1063 = vmul.f32 %v1004, %v1004
      %v1064 = vmul.f32 %v1005, %v1005
      %v1065 = vmul.f32 %v1006, %v1006
      %v1066 = vadd.f32 %v1058, %v1059
      %v1067 = vadd.f32 %v1066, %v1060
      %v1068 = vadd.f32 %v1067, %v1061
      %v1069 = vadd.f32 %v1068, %v1062
      %v1070 = vadd.f32 %v1069, %v1063
      %v1071 = vadd.f32 %v1070, %v1064
      %v1072 = vadd.f32 %v1071, %v1065
      %1073 = vadd.xlane.f32.xlu0 %v1072
      %v1074 = vpop.xlane.xlu0 %1073
      %v1075 = vrot.slane %v1074, 4
      %v1076 = vadd.f32 %v1074, %v1075
      %v1077 = vrot.slane %v1076, 2
      %v1078 = vadd.f32 %v1076, %v1077
      %v1079 = vrot.slane %v1078, 1
      %v1080 = vadd.f32 %v1078, %v1079
      %s1081 = vtos %v1080
      %v1082 = vstv %s1081
      %vm1083 = vcmask 0
      %1084 = vst.msk [vmem:[%s377] sm:$0x1] %vm1083, %v1082
      %s1085 = smul.u32 8, %s24
      %p1086 = scmp.lt.s32.totalorder %s23, 1
      %s1087 = scalar_select %p1086, %s23, 1
      %p1088 = scmp.lt.s32.totalorder %s1085, 7
      %s1089 = scalar_select %p1088, %s1085, 7
      %s1090 = smul.addr %s1087, 8
      %s1091 = sadd.s32 %s1089, %s1090
      %s1092 = smul.addr %s1091, 8
      %s1093 = scalar_lea.vmem %s4, %s1092
      %s1094 = smul.u32 8, %s24
      %p1095 = scmp.lt.s32.totalorder %s23, 1
      %s1096 = scalar_select %p1095, %s23, 1
      %p1097 = scmp.lt.s32.totalorder %s1094, 7
      %s1098 = scalar_select %p1097, %s1094, 7
      %s1099 = smul.addr %s1096, 8
      %s1100 = sadd.s32 %s1098, %s1099
      %s1101 = scalar_lea.vmem %s5, %s1100
      %p1102 = scmp.lt.s32.totalorder %s23, 1
      %s1103 = scalar_select %p1102, %s23, 1
      %p1104 = scmp.lt.s32.totalorder %s24, 0
      %s1105 = scalar_select %p1104, %s24, 0
      %s1106 = smul.addr %s1105, 2
      %s1107 = smul.addr %s1103, 2
      %s1108 = sadd.s32 %s1106, %s1107
      %s1109 = smul.addr %s1108, 8
      %s1110 = scalar_lea.vmem %s6, %s1109
      %p1111 = scmp.lt.s32.totalorder %s23, 1
      %s1112 = scalar_select %p1111, %s23, 1
      %p1113 = scmp.lt.s32.totalorder %s24, 0
      %s1114 = scalar_select %p1113, %s24, 0
      %s1115 = sadd.s32 %s1114, %s1112
      %s1116 = scalar_lea.vmem %s7, %s1115
      // Predicated region
      $region37: #{vector_quantizer_ema_forward.1} parent=35 // pred_check
        %p1117 = pneg %p142
      $region38: #{vector_quantizer_ema_forward.1} parent=35 // pred_check_branch
        %1119 = sbr.rel (%p1117) target = $region40
      $region39: #{vector_quantizer_ema_forward.1} parent=35 // pred_region
        %s1120 = smul.u32 8, %s24
      $region40: #{vector_quantizer_ema_forward.1} parent=35 // pred_fallthru
        _
      // Predicated region
      $region41: #{vector_quantizer_ema_forward.1} parent=35 // pred_check
        %p1121 = pneg %p170
      $region42: #{vector_quantizer_ema_forward.1} parent=35 // pred_check_branch
        %1123 = sbr.rel (%p1121) target = $region44
      $region43: #{vector_quantizer_ema_forward.1} parent=35 // pred_region
        %s1124 = smul.u32 8, %s24
      $region44: #{vector_quantizer_ema_forward.1} parent=35 // pred_fallthru
        _
      // Predicated region
      $region45: #{vector_quantizer_ema_forward.1} parent=35 // pred_check
        %p1125 = pneg %p198
      $region46: #{vector_quantizer_ema_forward.1} parent=35 // pred_check_branch
        %1127 = sbr.rel (%p1125) target = $region48
      $region47: #{vector_quantizer_ema_forward.1} parent=35 // pred_region
        _
      $region48: #{vector_quantizer_ema_forward.1} parent=35 // pred_fallthru
        _
      // Predicated region
      $region49: #{vector_quantizer_ema_forward.1} parent=35 // pred_check
        %p1128 = pneg %p226
      $region50: #{vector_quantizer_ema_forward.1} parent=35 // pred_check_branch
        %1130 = sbr.rel (%p1128) target = $region52
      $region51: #{vector_quantizer_ema_forward.1} parent=35 // pred_region
        _
      $region52: #{vector_quantizer_ema_forward.1} parent=35 // pred_fallthru
        _
    $region36: #{vector_quantizer_ema_forward.1} parent=5 // pred_fallthru
      _
    %p1131 = scmp.le.s32.totalorder 2, %s14
    // Predicated region
    $region53: #{vector_quantizer_ema_forward.1} parent=5 // pred_check
      %p1132 = pneg %p1131
    $region54: #{vector_quantizer_ema_forward.1} parent=5 // pred_check_branch
      %1134 = sbr.rel (%p1132) target = $region56
    $region55: #{vector_quantizer_ema_forward.1} parent=5 // pred_region
      %s1135 = ssub.s32 %s14, 2
      // Predicated region
      $region57: #{vector_quantizer_ema_forward.1} parent=55 // pred_check
        %p1136 = pneg %p148
      $region58: #{vector_quantizer_ema_forward.1} parent=55 // pred_check_branch
        %1138 = sbr.rel (%p1136) target = $region60
      $region59: #{vector_quantizer_ema_forward.1} parent=55 // pred_region
        %s1139 = smul.u32 8, %s26
        %p1140 = scmp.lt.s32.totalorder %s25, 1
        %s1141 = scalar_select %p1140, %s25, 1
        %p1142 = scmp.lt.s32.totalorder %s1139, 7
        %s1143 = scalar_select %p1142, %s1139, 7
        %s1144 = smul.addr %s1141, 8
        %s1145 = sadd.s32 %s1143, %s1144
        %s1146 = smul.addr %s1145, 8
        %s1147 = scalar_lea.vmem %s4, %s1146
      $region60: #{vector_quantizer_ema_forward.1} parent=55 // pred_fallthru
        _
      // Predicated region
      $region61: #{vector_quantizer_ema_forward.1} parent=55 // pred_check
        %p1148 = pneg %p176
      $region62: #{vector_quantizer_ema_forward.1} parent=55 // pred_check_branch
        %1150 = sbr.rel (%p1148) target = $region64
      $region63: #{vector_quantizer_ema_forward.1} parent=55 // pred_region
        %s1151 = smul.u32 8, %s26
        %p1152 = scmp.lt.s32.totalorder %s25, 1
        %s1153 = scalar_select %p1152, %s25, 1
        %p1154 = scmp.lt.s32.totalorder %s1151, 7
        %s1155 = scalar_select %p1154, %s1151, 7
        %s1156 = smul.addr %s1153, 8
        %s1157 = sadd.s32 %s1155, %s1156
        %s1158 = scalar_lea.vmem %s5, %s1157
      $region64: #{vector_quantizer_ema_forward.1} parent=55 // pred_fallthru
        _
      // Predicated region
      $region65: #{vector_quantizer_ema_forward.1} parent=55 // pred_check
        %p1159 = pneg %p204
      $region66: #{vector_quantizer_ema_forward.1} parent=55 // pred_check_branch
        %1161 = sbr.rel (%p1159) target = $region68
      $region67: #{vector_quantizer_ema_forward.1} parent=55 // pred_region
        %p1162 = scmp.lt.s32.totalorder %s25, 1
        %s1163 = scalar_select %p1162, %s25, 1
        %p1164 = scmp.lt.s32.totalorder %s26, 0
        %s1165 = scalar_select %p1164, %s26, 0
        %s1166 = smul.addr %s1165, 2
        %s1167 = smul.addr %s1163, 2
        %s1168 = sadd.s32 %s1166, %s1167
        %s1169 = smul.addr %s1168, 8
        %s1170 = scalar_lea.vmem %s6, %s1169
      $region68: #{vector_quantizer_ema_forward.1} parent=55 // pred_fallthru
        _
      // Predicated region
      $region69: #{vector_quantizer_ema_forward.1} parent=55 // pred_check
        %p1171 = pneg %p232
      $region70: #{vector_quantizer_ema_forward.1} parent=55 // pred_check_branch
        %1173 = sbr.rel (%p1171) target = $region72
      $region71: #{vector_quantizer_ema_forward.1} parent=55 // pred_region
        %p1174 = scmp.lt.s32.totalorder %s25, 1
        %s1175 = scalar_select %p1174, %s25, 1
        %p1176 = scmp.lt.s32.totalorder %s26, 0
        %s1177 = scalar_select %p1176, %s26, 0
        %s1178 = sadd.s32 %s1177, %s1175
        %s1179 = scalar_lea.vmem %s7, %s1178
      $region72: #{vector_quantizer_ema_forward.1} parent=55 // pred_fallthru
        _
    $region56: #{vector_quantizer_ema_forward.1} parent=5 // pred_fallthru
      _
  $region6: #{vector_quantizer_ema_forward.1} parent=0 // loop_footer
    %s18 = sadd.s32 1, %s14
  $region7: #{vector_quantizer_ema_forward.1} parent=0 // loop_footer_branch
    %13 = sbr.rel target = $region3
  $region8: #{vector_quantizer_ema_forward.1} parent=0 // loop_exit
    _

</llo_original>
